<compile_context>
chip_gen: v6e
topology: v6e:2x2x1
jax: 0.10.0
libtpu: 0.0.40
codegen_flags: <defaults>
</compile_context>

<pallas_src>
import jax
import jax.numpy as jnp
from jax.experimental import pallas as pl
from jax.experimental.pallas import tpu as pltpu

# Matmul-input dtype. bf16 feeds the MXU at full rate and halves weight DMA on
# v5e/v6e/v7x; accumulation is f32 (preferred_element_type) and all elementwise
# work (bias / ReLU / final reduction) is f32 (also suits v5e's f32-only VPU).
# Set to jnp.float32 to reproduce the PyTorch f32 module bit-for-bit.
COMPUTE_DTYPE = jnp.bfloat16


def _round_up(x, m):
    return ((x + m - 1) // m) * m


def critic_kernel(state_ref, action_ref, w1_ref, b1_ref, w2_ref, b2_ref,
                  w3_ref, b3_ref, out_ref):
    # torch.cat([state, action], 1): in-kernel lane concat of the two loaded
    # blocks (masked lane shifts, hidden under MXU work) -> layer 1 stays ONE
    # MXU matmul (do NOT split into two small-K matmuls: K pads to a full
    # contraction tile either way).
    x = jnp.concatenate([state_ref[...], action_ref[...]], axis=-1)

    # Layer 1: Linear(state_dim + action_dim -> hidden) + ReLU.
    h1 = jnp.dot(x.astype(w1_ref.dtype), w1_ref[...],
                 preferred_element_type=jnp.float32)
    h1 = jnp.maximum(h1 + b1_ref[...], 0.0)

    # Layer 2: Linear(hidden -> hidden) + ReLU.
    h2 = jnp.dot(h1.astype(w2_ref.dtype), w2_ref[...],
                 preferred_element_type=jnp.float32)
    h2 = jnp.maximum(h2 + b2_ref[...], 0.0)

    # Layer 3: Linear(hidden -> 1), kept OFF the MXU (it would cost a full
    # K-tile pass for an N=1 output): VPU multiply + cross-lane (XLU) reduce.
    w3f = w3_ref[...].astype(jnp.float32)                 # (1, H) broadcast row
    q = jnp.sum(h2 * w3f, axis=-1, keepdims=True)         # (tile_b, 1) f32
    out_ref[...] = (q + b3_ref[0]).astype(out_ref.dtype)


def _pick_batch_tile(B, batch_tile):
    """Batch tile: a multiple of 8 (sublane), sized to minimize ragged-block
    padding waste, with >= 2 grid steps for B > 256 so both v7x TensorCores
    get work (no-op on single-TC v5e/v6e)."""
    if B <= 256:
        return max(8, _round_up(B, 8))                   # single block
    cap = min(batch_tile, _round_up(pl.cdiv(B, 2), 8))   # guarantee >= 2 steps
    n_tiles = pl.cdiv(B, cap)
    return _round_up(pl.cdiv(B, n_tiles), 8)             # balanced, minimal pad


def critic_forward(state, action, params, *, batch_tile=1024):
    """state: (B, state_dim), action: (B, action_dim) -> (B, 1) float32."""
    w1, b1, w2, b2, w3, b3 = params
    B, sd = state.shape
    ad = action.shape[1]
    K1 = sd + ad
    H = w1.shape[1]

    tile_b = _pick_batch_tile(B, batch_tile)
    grid = (pl.cdiv(B, tile_b),)

    flops = 2 * grid[0] * tile_b * (K1 * H + H * H + H)
    bytes_accessed = (state.size * state.dtype.itemsize
                      + action.size * action.dtype.itemsize
                      + sum(p.size * p.dtype.itemsize for p in params)
                      + B * 4)

    # Note: weight/bias specs use constant index_maps, so Pallas already skips
    # re-DMA across grid steps (pl.Buffered(1) would only trim bookkeeping).
    return pl.pallas_call(
        critic_kernel,
        grid=grid,
        in_specs=[
            pl.BlockSpec((tile_b, sd), lambda i: (i, 0)),        # state (batch-tiled)
            pl.BlockSpec((tile_b, ad), lambda i: (i, 0)),        # action (batch-tiled)
            pl.BlockSpec(w1.shape, lambda i: (0, 0)),            # weights stay
            pl.BlockSpec(b1.shape, lambda i: (0, 0)),            #   resident in
            pl.BlockSpec(w2.shape, lambda i: (0, 0)),            #   VMEM across
            pl.BlockSpec(b2.shape, lambda i: (0, 0)),            #   grid steps
            pl.BlockSpec(w3.shape, lambda i: (0, 0)),
            pl.BlockSpec(memory_space=pltpu.MemorySpace.SMEM),   # b3 scalar
        ],
        out_specs=pl.BlockSpec((tile_b, 1), lambda i: (i, 0)),   # (B, 1) directly
        out_shape=jax.ShapeDtypeStruct((B, 1), jnp.float32),
        compiler_params=pltpu.CompilerParams(
            dimension_semantics=("parallel",),      # shard grid steps across 2 TCs on v7x
            vmem_limit_bytes=32 << 20),             # headroom for big tiles (v5e default 16 MiB)
        cost_estimate=pl.CostEstimate(flops=flops, transcendentals=0,
                                      bytes_accessed=bytes_accessed),
    )(state, action, w1, b1, w2, b2, w3, b3)


def init_params(key, state_dim, action_dim, hidden_dim, dtype=COMPUTE_DTYPE):
    """PyTorch nn.Linear default init (uniform +/- 1/sqrt(fan_in)).
    Weights stored as (in_features, out_features); w3 as a (1, hidden) row.
    hidden_dim should be a multiple of 128 (256 fills a v6e/v7x MXU tile)."""
    ks = jax.random.split(key, 6)
    in1 = state_dim + action_dim

    def u(k, shape, fan_in):
        bound = 1.0 / jnp.sqrt(jnp.float32(fan_in))
        return jax.random.uniform(k, shape, jnp.float32, -bound, bound)

    w1 = u(ks[0], (in1, hidden_dim), in1).astype(dtype)
    b1 = u(ks[1], (1, hidden_dim), in1)                        # f32
    w2 = u(ks[2], (hidden_dim, hidden_dim), hidden_dim).astype(dtype)
    b2 = u(ks[3], (1, hidden_dim), hidden_dim)                 # f32
    w3 = u(ks[4], (1, hidden_dim), hidden_dim).astype(dtype)   # row vector
    b3 = u(ks[5], (1,), hidden_dim)                            # f32 scalar (SMEM)
    return (w1, b1, w2, b2, w3, b3)


def critic_reference(state, action, params):
    """Plain-JAX mirror of the kernel's math (same bf16 cast points, f32
    accumulation, f32 VPU-style final reduction) with PyTorch module
    semantics."""
    w1, b1, w2, b2, w3, b3 = params
    x = jnp.concatenate([state, action], axis=1).astype(w1.dtype)
    h1 = jnp.maximum(jnp.dot(x, w1, preferred_element_type=jnp.float32) + b1, 0.0)
    h2 = jnp.maximum(jnp.dot(h1.astype(w2.dtype), w2,
                             preferred_element_type=jnp.float32) + b2, 0.0)
    q = jnp.sum(h2 * w3.astype(jnp.float32), axis=-1, keepdims=True)
    return q + b3[0]


if __name__ == "__main__":
    batch = 300           # > 256 -> 2 grid steps (both v7x TCs) + ragged last block
    state_dim = 16
    action_dim = 8
    hidden_dim = 256      # module default; multiple of 128 -> full lane/MXU use

    key = jax.random.PRNGKey(0)
    k_params, k_state, k_action = jax.random.split(key, 3)

    params = init_params(k_params, state_dim, action_dim, hidden_dim)
    state = jax.random.normal(k_state, (batch, state_dim), jnp.float32)
    action = jax.random.normal(k_action, (batch, action_dim), jnp.float32)

    out = jax.block_until_ready(critic_forward(state, action, params))
    ref = critic_reference(state, action, params)

    assert out.shape == (batch, 1)
    tol = 2e-3 if COMPUTE_DTYPE == jnp.bfloat16 else 1e-5
    assert jnp.allclose(out, ref, atol=tol, rtol=tol), (
        "mismatch vs reference: max abs diff "
        f"{jnp.max(jnp.abs(out - ref))}")

    print("KERNEL_OK")
</pallas_src>

<mosaic_0001>
module attributes {stable_mosaic.version = 11 : i64} {
  func.func @critic_kernel(%arg0: i32, %arg1: memref<152x16xf32, #tpu.memory_space<vmem>>, %arg2: memref<152x8xf32, #tpu.memory_space<vmem>>, %arg3: memref<24x256xbf16, #tpu.memory_space<vmem>>, %arg4: memref<1x256xf32, #tpu.memory_space<vmem>>, %arg5: memref<256x256xbf16, #tpu.memory_space<vmem>>, %arg6: memref<1x256xf32, #tpu.memory_space<vmem>>, %arg7: memref<1x256xbf16, #tpu.memory_space<vmem>>, %arg8: memref<1xf32, #tpu.memory_space<smem>>, %arg9: memref<152x1xf32, #tpu.memory_space<vmem>>) attributes {dimension_semantics = [#tpu.dimension_semantics<parallel>], iteration_bounds = array<i64: 2>, scalar_prefetch = 0 : i64, scratch_operands = 0 : i64, tpu.core_type = #tpu.core_type<tc>, window_params = [{transform_indices = @transform_0, window_bounds = array<i64: 152, 16>}, {transform_indices = @transform_1, window_bounds = array<i64: 152, 8>}, {pipeline_mode = #tpu.pipeline_mode<synchronous>, transform_indices = @transform_2, window_bounds = array<i64: 24, 256>}, {pipeline_mode = #tpu.pipeline_mode<synchronous>, transform_indices = @transform_3, window_bounds = array<i64: 1, 256>}, {pipeline_mode = #tpu.pipeline_mode<synchronous>, transform_indices = @transform_4, window_bounds = array<i64: 256, 256>}, {pipeline_mode = #tpu.pipeline_mode<synchronous>, transform_indices = @transform_5, window_bounds = array<i64: 1, 256>}, {pipeline_mode = #tpu.pipeline_mode<synchronous>, transform_indices = @transform_6, window_bounds = array<i64: 1, 256>}, {transform_indices = @transform_7, window_bounds = array<i64: 1>}, {transform_indices = @transform_8, window_bounds = array<i64: 152, 1>}]} {
    %c0 = arith.constant 0 : index
    %c0_0 = arith.constant 0 : index
    %0 = vector.load %arg1[%c0, %c0_0] : memref<152x16xf32, #tpu.memory_space<vmem>>, vector<152x16xf32>
    %c0_1 = arith.constant 0 : index
    %c0_2 = arith.constant 0 : index
    %1 = vector.load %arg2[%c0_1, %c0_2] : memref<152x8xf32, #tpu.memory_space<vmem>>, vector<152x8xf32>
    %2 = tpu.concatenate %0, %1 in 1 : vector<152x16xf32>, vector<152x8xf32> -> vector<152x24xf32>
    %3 = arith.truncf %2 : vector<152x24xf32> to vector<152x24xbf16>
    %c0_3 = arith.constant 0 : index
    %c0_4 = arith.constant 0 : index
    %4 = vector.load %arg3[%c0_3, %c0_4] : memref<24x256xbf16, #tpu.memory_space<vmem>>, vector<24x256xbf16>
    %cst = arith.constant dense<0.000000e+00> : vector<152x256xf32>
    %5 = tpu.matmul %3, %4, %cst {dimension_numbers = #tpu.dot_dimension_numbers<[1], [0], [0], [1], [0, 0, 1, 1], [], []>} : vector<152x24xbf16>, vector<24x256xbf16>, vector<152x256xf32> -> vector<152x256xf32>
    %c0_5 = arith.constant 0 : index
    %c0_6 = arith.constant 0 : index
    %6 = vector.load %arg4[%c0_5, %c0_6] : memref<1x256xf32, #tpu.memory_space<vmem>>, vector<1x256xf32>
    %7 = vector.broadcast %6 : vector<1x256xf32> to vector<152x256xf32>
    %8 = arith.addf %5, %7 : vector<152x256xf32>
    %cst_7 = arith.constant 0.000000e+00 : f32
    %9 = vector.broadcast %cst_7 : f32 to vector<152x256xf32>
    %10 = arith.maximumf %8, %9 : vector<152x256xf32>
    %11 = arith.truncf %10 : vector<152x256xf32> to vector<152x256xbf16>
    %c0_8 = arith.constant 0 : index
    %c0_9 = arith.constant 0 : index
    %12 = vector.load %arg5[%c0_8, %c0_9] : memref<256x256xbf16, #tpu.memory_space<vmem>>, vector<256x256xbf16>
    %cst_10 = arith.constant dense<0.000000e+00> : vector<152x256xf32>
    %13 = tpu.matmul %11, %12, %cst_10 {dimension_numbers = #tpu.dot_dimension_numbers<[1], [0], [0], [1], [0, 0, 1, 1], [], []>} : vector<152x256xbf16>, vector<256x256xbf16>, vector<152x256xf32> -> vector<152x256xf32>
    %c0_11 = arith.constant 0 : index
    %c0_12 = arith.constant 0 : index
    %14 = vector.load %arg6[%c0_11, %c0_12] : memref<1x256xf32, #tpu.memory_space<vmem>>, vector<1x256xf32>
    %15 = vector.broadcast %14 : vector<1x256xf32> to vector<152x256xf32>
    %16 = arith.addf %13, %15 : vector<152x256xf32>
    %cst_13 = arith.constant 0.000000e+00 : f32
    %17 = vector.broadcast %cst_13 : f32 to vector<152x256xf32>
    %18 = arith.maximumf %16, %17 : vector<152x256xf32>
    %c0_14 = arith.constant 0 : index
    %c0_15 = arith.constant 0 : index
    %19 = vector.load %arg7[%c0_14, %c0_15] : memref<1x256xbf16, #tpu.memory_space<vmem>>, vector<1x256xbf16>
    %20 = arith.extf %19 : vector<1x256xbf16> to vector<1x256xf32>
    %21 = vector.broadcast %20 : vector<1x256xf32> to vector<152x256xf32>
    %22 = arith.mulf %18, %21 : vector<152x256xf32>
    %cst_16 = arith.constant dense<0.000000e+00> : vector<152xf32>
    %23 = vector.multi_reduction <add>, %22, %cst_16 [1] : vector<152x256xf32> to vector<152xf32>
    %24 = vector.shape_cast %23 : vector<152xf32> to vector<152x1xf32>
    %c0_17 = arith.constant 0 : index
    %25 = memref.load %arg8[%c0_17] : memref<1xf32, #tpu.memory_space<smem>>
    %26 = vector.broadcast %25 : f32 to vector<152x1xf32>
    %27 = arith.addf %24, %26 : vector<152x1xf32>
    %c0_18 = arith.constant 0 : index
    %c0_19 = arith.constant 0 : index
    %28 = vector.load %arg9[%c0_18, %c0_19] : memref<152x1xf32, #tpu.memory_space<vmem>>, vector<152x1xf32>
    tpu.vector_store %arg9[%c0_18, %c0_19], %27 {strides = array<i32>} : memref<152x1xf32, #tpu.memory_space<vmem>>, vector<152x1xf32>,
    return
  }
  func.func @transform_0(%arg0: i32) -> (i32, i32) {
    %c0_i32 = arith.constant 0 : i32
    %c0_i32_0 = arith.constant 0 : i32
    return %arg0, %c0_i32 : i32, i32
  }
  func.func @transform_1(%arg0: i32) -> (i32, i32) {
    %c0_i32 = arith.constant 0 : i32
    %c0_i32_0 = arith.constant 0 : i32
    return %arg0, %c0_i32 : i32, i32
  }
  func.func @transform_2(%arg0: i32) -> (i32, i32) {
    %c0_i32 = arith.constant 0 : i32
    %c0_i32_0 = arith.constant 0 : i32
    %c0_i32_1 = arith.constant 0 : i32
    return %c0_i32, %c0_i32_0 : i32, i32
  }
  func.func @transform_3(%arg0: i32) -> (i32, i32) {
    %c0_i32 = arith.constant 0 : i32
    %c0_i32_0 = arith.constant 0 : i32
    %c0_i32_1 = arith.constant 0 : i32
    return %c0_i32, %c0_i32_0 : i32, i32
  }
  func.func @transform_4(%arg0: i32) -> (i32, i32) {
    %c0_i32 = arith.constant 0 : i32
    %c0_i32_0 = arith.constant 0 : i32
    %c0_i32_1 = arith.constant 0 : i32
    return %c0_i32, %c0_i32_0 : i32, i32
  }
  func.func @transform_5(%arg0: i32) -> (i32, i32) {
    %c0_i32 = arith.constant 0 : i32
    %c0_i32_0 = arith.constant 0 : i32
    %c0_i32_1 = arith.constant 0 : i32
    return %c0_i32, %c0_i32_0 : i32, i32
  }
  func.func @transform_6(%arg0: i32) -> (i32, i32) {
    %c0_i32 = arith.constant 0 : i32
    %c0_i32_0 = arith.constant 0 : i32
    %c0_i32_1 = arith.constant 0 : i32
    return %c0_i32, %c0_i32_0 : i32, i32
  }
  func.func @transform_7(%arg0: i32) -> i32 {
    %c0_i32 = arith.constant 0 : i32
    %c0_i32_0 = arith.constant 0 : i32
    return %c0_i32 : i32
  }
  func.func @transform_8(%arg0: i32) -> (i32, i32) {
    %c0_i32 = arith.constant 0 : i32
    %c0_i32_0 = arith.constant 0 : i32
    return %arg0, %c0_i32 : i32, i32
  }
}

</mosaic_0001>

<llo_original>
// kernel: tpu_custom_call.1
$region0: #{tpu_custom_call.1}
  #allocation0 [shape = 'u32[]', space=smem, size = 0x4, offset = 0x4, fixed_abs, tag = 'smem constant byte address 0x4 - core index']
  #allocation1 [shape = 'u32[144,128]{1,0:T(1,128)}', space=vmem, size = 0x12000, scoped, tag = 'internal scratch']
  #allocation2 [shape = 'f32[1]{0:T(128)S(6)}', space=smem, size = 0x200, scoped, tag = 'scoped memory for tpu_custom_call.1']
  %s0 = inlined_call_operand.vmem [shape: f32[300,16], index: 0, kind: input, shape index: {}]
  %s1 = inlined_call_operand.vmem [shape: f32[300,8], index: 1, kind: input, shape index: {}]
  %s2 = inlined_call_operand.vmem [shape: bf16[24,256], index: 2, kind: input, shape index: {}]
  %s3 = inlined_call_operand.vmem [shape: f32[1,256], index: 3, kind: input, shape index: {}]
  %s4 = inlined_call_operand.vmem [shape: bf16[256,256], index: 4, kind: input, shape index: {}]
  %s5 = inlined_call_operand.vmem [shape: f32[1,256], index: 5, kind: input, shape index: {}]
  %s6 = inlined_call_operand.vmem [shape: bf16[1,256], index: 6, kind: input, shape index: {}]
  %s7 = inlined_call_operand.<no memory space> [shape: f32[1], index: 7, kind: input, shape index: {}]
  %s8 = inlined_call_operand.vmem [shape: f32[300,1], index: 8, kind: output, shape index: {}]
  %s9 = sld [smem:[#allocation0]]
  $region65: #{tpu_custom_call.1} parent=0
    _
  %s11 = ssub.s32 1, %s9
  %s12 = scalar_select 0, %s11, %s9
  %13 = sst [smem:[#allocation2]] %s7
  loop: start=0, step=1, limit=4
  $region2: #{tpu_custom_call.1} parent=0 // loop_pre_header
    _
  $region3: #{tpu_custom_call.1} parent=0 // loop_header
    %s15 = sphi 0, %s19
    %p16 = scmp.ge.s32.totalorder %s15, 4
    %s25 = sphi 0, %s27
    %s28 = sphi 0, %s25
    %s29 = sphi 0, %s28
    %s45 = sphi 0, %s29
    %s51 = sphi 0, %s53
    %s54 = sphi 0, %s51
    %s55 = sphi 0, %s54
    %s71 = sphi 0, %s55
    %s75 = sphi 0, %s75
    %s77 = sphi 0, %s75
    %s78 = sphi 0, %s77
    %s92 = sphi 0, %s78
    %s96 = sphi 0, %s96
    %s98 = sphi 0, %s96
    %s99 = sphi 0, %s98
    %s113 = sphi 0, %s99
    %s117 = sphi 0, %s117
    %s119 = sphi 0, %s117
    %s120 = sphi 0, %s119
    %s134 = sphi 0, %s120
    %s138 = sphi 0, %s138
    %s140 = sphi 0, %s138
    %s141 = sphi 0, %s140
    %s155 = sphi 0, %s141
    %s159 = sphi 0, %s159
    %s161 = sphi 0, %s159
    %s162 = sphi 0, %s161
    %s176 = sphi 0, %s162
    %s180 = sphi 0, %s180
    %s182 = sphi 0, %s180
    %s183 = sphi 0, %s182
    %s197 = sphi 0, %s183
    %s203 = sphi 0, %s205
    %s206 = sphi 0, %s203
    %s207 = sphi 0, %s206
    %s223 = sphi 0, %s207
  $region4: #{tpu_custom_call.1} parent=0 // loop_header_branch
    %18 = sbr.rel (%p16) target = $region8
  $region5: #{tpu_custom_call.1} parent=0 // loop_body
    %s20 = ssub.s32 %s15, 1
    %s21 = ssub.s32 %s15, 2
    %s22 = sadd.s32 %s15, 1
    %s23 = ssub.s32 %s15, %s22
    %p24 = scmp.eq.s32.totalorder %s23, 0
    %s26 = sadd.s32 %s25, 1
    %s27 = scalar_select %p24, %s25, %s26
    %p30 = pneg %p24
    %p31 = scmp.eq.s32.totalorder %s15, 1
    %p32 = por %p30, %p31
    %p33 = scmp.ne.s32.totalorder %s25, %s28
    %p34 = scmp.eq.s32.totalorder %s15, 0
    %p35 = por %p33, %p34
    %p36 = scmp.ne.s32.totalorder %s25, %s28
    %p37 = scmp.eq.s32.totalorder %s20, 1
    %p38 = por %p36, %p37
    %p39 = scmp.ne.s32.totalorder %s28, %s29
    %p40 = scmp.eq.s32.totalorder %s20, 0
    %p41 = por %p39, %p40
    %p42 = scmp.ne.s32.totalorder %s28, %s29
    %p43 = scmp.eq.s32.totalorder %s21, 1
    %p44 = por %p42, %p43
    %p46 = scmp.ne.s32.totalorder %s29, %s45
    %p47 = scmp.eq.s32.totalorder %s21, 0
    %p48 = por %p46, %p47
    %s49 = ssub.s32 %s15, %s22
    %p50 = scmp.eq.s32.totalorder %s49, 0
    %s52 = sadd.s32 %s51, 1
    %s53 = scalar_select %p50, %s51, %s52
    %p56 = pneg %p50
    %p57 = scmp.eq.s32.totalorder %s15, 1
    %p58 = por %p56, %p57
    %p59 = scmp.ne.s32.totalorder %s51, %s54
    %p60 = scmp.eq.s32.totalorder %s15, 0
    %p61 = por %p59, %p60
    %p62 = scmp.ne.s32.totalorder %s51, %s54
    %p63 = scmp.eq.s32.totalorder %s20, 1
    %p64 = por %p62, %p63
    %p65 = scmp.ne.s32.totalorder %s54, %s55
    %p66 = scmp.eq.s32.totalorder %s20, 0
    %p67 = por %p65, %p66
    %p68 = scmp.ne.s32.totalorder %s54, %s55
    %p69 = scmp.eq.s32.totalorder %s21, 1
    %p70 = por %p68, %p69
    %p72 = scmp.ne.s32.totalorder %s55, %s71
    %p73 = scmp.eq.s32.totalorder %s21, 0
    %p74 = por %p72, %p73
    %s76 = sadd.s32 %s75, 1
    %p79 = scmp.eq.s32.totalorder %s15, 1
    %p80 = scmp.ne.s32.totalorder %s75, %s77
    %p81 = scmp.eq.s32.totalorder %s15, 0
    %p82 = por %p80, %p81
    %p83 = scmp.ne.s32.totalorder %s75, %s77
    %p84 = scmp.eq.s32.totalorder %s20, 1
    %p85 = por %p83, %p84
    %p86 = scmp.ne.s32.totalorder %s77, %s78
    %p87 = scmp.eq.s32.totalorder %s20, 0
    %p88 = por %p86, %p87
    %p89 = scmp.ne.s32.totalorder %s77, %s78
    %p90 = scmp.eq.s32.totalorder %s21, 1
    %p91 = por %p89, %p90
    %p93 = scmp.ne.s32.totalorder %s78, %s92
    %p94 = scmp.eq.s32.totalorder %s21, 0
    %p95 = por %p93, %p94
    %s97 = sadd.s32 %s96, 1
    %p100 = scmp.eq.s32.totalorder %s15, 1
    %p101 = scmp.ne.s32.totalorder %s96, %s98
    %p102 = scmp.eq.s32.totalorder %s15, 0
    %p103 = por %p101, %p102
    %p104 = scmp.ne.s32.totalorder %s96, %s98
    %p105 = scmp.eq.s32.totalorder %s20, 1
    %p106 = por %p104, %p105
    %p107 = scmp.ne.s32.totalorder %s98, %s99
    %p108 = scmp.eq.s32.totalorder %s20, 0
    %p109 = por %p107, %p108
    %p110 = scmp.ne.s32.totalorder %s98, %s99
    %p111 = scmp.eq.s32.totalorder %s21, 1
    %p112 = por %p110, %p111
    %p114 = scmp.ne.s32.totalorder %s99, %s113
    %p115 = scmp.eq.s32.totalorder %s21, 0
    %p116 = por %p114, %p115
    %s118 = sadd.s32 %s117, 1
    %p121 = scmp.eq.s32.totalorder %s15, 1
    %p122 = scmp.ne.s32.totalorder %s117, %s119
    %p123 = scmp.eq.s32.totalorder %s15, 0
    %p124 = por %p122, %p123
    %p125 = scmp.ne.s32.totalorder %s117, %s119
    %p126 = scmp.eq.s32.totalorder %s20, 1
    %p127 = por %p125, %p126
    %p128 = scmp.ne.s32.totalorder %s119, %s120
    %p129 = scmp.eq.s32.totalorder %s20, 0
    %p130 = por %p128, %p129
    %p131 = scmp.ne.s32.totalorder %s119, %s120
    %p132 = scmp.eq.s32.totalorder %s21, 1
    %p133 = por %p131, %p132
    %p135 = scmp.ne.s32.totalorder %s120, %s134
    %p136 = scmp.eq.s32.totalorder %s21, 0
    %p137 = por %p135, %p136
    %s139 = sadd.s32 %s138, 1
    %p142 = scmp.eq.s32.totalorder %s15, 1
    %p143 = scmp.ne.s32.totalorder %s138, %s140
    %p144 = scmp.eq.s32.totalorder %s15, 0
    %p145 = por %p143, %p144
    %p146 = scmp.ne.s32.totalorder %s138, %s140
    %p147 = scmp.eq.s32.totalorder %s20, 1
    %p148 = por %p146, %p147
    %p149 = scmp.ne.s32.totalorder %s140, %s141
    %p150 = scmp.eq.s32.totalorder %s20, 0
    %p151 = por %p149, %p150
    %p152 = scmp.ne.s32.totalorder %s140, %s141
    %p153 = scmp.eq.s32.totalorder %s21, 1
    %p154 = por %p152, %p153
    %p156 = scmp.ne.s32.totalorder %s141, %s155
    %p157 = scmp.eq.s32.totalorder %s21, 0
    %p158 = por %p156, %p157
    %s160 = sadd.s32 %s159, 1
    %p163 = scmp.eq.s32.totalorder %s15, 1
    %p164 = scmp.ne.s32.totalorder %s159, %s161
    %p165 = scmp.eq.s32.totalorder %s15, 0
    %p166 = por %p164, %p165
    %p167 = scmp.ne.s32.totalorder %s159, %s161
    %p168 = scmp.eq.s32.totalorder %s20, 1
    %p169 = por %p167, %p168
    %p170 = scmp.ne.s32.totalorder %s161, %s162
    %p171 = scmp.eq.s32.totalorder %s20, 0
    %p172 = por %p170, %p171
    %p173 = scmp.ne.s32.totalorder %s161, %s162
    %p174 = scmp.eq.s32.totalorder %s21, 1
    %p175 = por %p173, %p174
    %p177 = scmp.ne.s32.totalorder %s162, %s176
    %p178 = scmp.eq.s32.totalorder %s21, 0
    %p179 = por %p177, %p178
    %s181 = sadd.s32 %s180, 1
    %p184 = scmp.eq.s32.totalorder %s15, 1
    %p185 = scmp.ne.s32.totalorder %s180, %s182
    %p186 = scmp.eq.s32.totalorder %s15, 0
    %p187 = por %p185, %p186
    %p188 = scmp.ne.s32.totalorder %s180, %s182
    %p189 = scmp.eq.s32.totalorder %s20, 1
    %p190 = por %p188, %p189
    %p191 = scmp.ne.s32.totalorder %s182, %s183
    %p192 = scmp.eq.s32.totalorder %s20, 0
    %p193 = por %p191, %p192
    %p194 = scmp.ne.s32.totalorder %s182, %s183
    %p195 = scmp.eq.s32.totalorder %s21, 1
    %p196 = por %p194, %p195
    %p198 = scmp.ne.s32.totalorder %s183, %s197
    %p199 = scmp.eq.s32.totalorder %s21, 0
    %p200 = por %p198, %p199
    %s201 = ssub.s32 %s15, %s22
    %p202 = scmp.eq.s32.totalorder %s201, 0
    %s204 = sadd.s32 %s203, 1
    %s205 = scalar_select %p202, %s203, %s204
    %p208 = pneg %p202
    %p209 = scmp.eq.s32.totalorder %s15, 1
    %p210 = por %p208, %p209
    %p211 = scmp.ne.s32.totalorder %s203, %s206
    %p212 = scmp.eq.s32.totalorder %s15, 0
    %p213 = por %p211, %p212
    %p214 = scmp.ne.s32.totalorder %s203, %s206
    %p215 = scmp.eq.s32.totalorder %s20, 1
    %p216 = por %p214, %p215
    %p217 = scmp.ne.s32.totalorder %s206, %s207
    %p218 = scmp.eq.s32.totalorder %s20, 0
    %p219 = por %p217, %p218
    %p220 = scmp.ne.s32.totalorder %s206, %s207
    %p221 = scmp.eq.s32.totalorder %s21, 1
    %p222 = por %p220, %p221
    %p224 = scmp.ne.s32.totalorder %s207, %s223
    %p225 = scmp.eq.s32.totalorder %s21, 0
    %p226 = por %p224, %p225
    %p227 = scmp.le.s32.totalorder 1, %s15
    %p228 = scmp.lt.s32.totalorder %s15, 3
    %p229 = pnand %p227, %p228
    %p230 = pneg %p229
    // Predicated region
    $region9: #{tpu_custom_call.1} parent=5 // pred_check
      _
    $region10: #{tpu_custom_call.1} parent=5 // pred_check_branch
      %232 = sbr.rel (%p229) target = $region12
    $region11: #{tpu_custom_call.1} parent=5 // pred_region
      %s233 = ssub.s32 %s15, 1
      // Predicated region
      $region13: #{tpu_custom_call.1} parent=11 // pred_check
        %p234 = pneg %p88
      $region14: #{tpu_custom_call.1} parent=11 // pred_check_branch
        %236 = sbr.rel (%p234) target = $region16
      $region15: #{tpu_custom_call.1} parent=11 // pred_region
        _
      $region16: #{tpu_custom_call.1} parent=11 // pred_fallthru
        _
      // Predicated region
      $region17: #{tpu_custom_call.1} parent=11 // pred_check
        %p237 = pneg %p109
      $region18: #{tpu_custom_call.1} parent=11 // pred_check_branch
        %239 = sbr.rel (%p237) target = $region20
      $region19: #{tpu_custom_call.1} parent=11 // pred_region
        _
      $region20: #{tpu_custom_call.1} parent=11 // pred_fallthru
        _
      // Predicated region
      $region21: #{tpu_custom_call.1} parent=11 // pred_check
        %p240 = pneg %p130
      $region22: #{tpu_custom_call.1} parent=11 // pred_check_branch
        %242 = sbr.rel (%p240) target = $region24
      $region23: #{tpu_custom_call.1} parent=11 // pred_region
        _
      $region24: #{tpu_custom_call.1} parent=11 // pred_fallthru
        _
      // Predicated region
      $region25: #{tpu_custom_call.1} parent=11 // pred_check
        %p243 = pneg %p151
      $region26: #{tpu_custom_call.1} parent=11 // pred_check_branch
        %245 = sbr.rel (%p243) target = $region28
      $region27: #{tpu_custom_call.1} parent=11 // pred_region
        _
      $region28: #{tpu_custom_call.1} parent=11 // pred_fallthru
        _
      // Predicated region
      $region29: #{tpu_custom_call.1} parent=11 // pred_check
        %p246 = pneg %p172
      $region30: #{tpu_custom_call.1} parent=11 // pred_check_branch
        %248 = sbr.rel (%p246) target = $region32
      $region31: #{tpu_custom_call.1} parent=11 // pred_region
        _
      $region32: #{tpu_custom_call.1} parent=11 // pred_fallthru
        _
      // Predicated region
      $region33: #{tpu_custom_call.1} parent=11 // pred_check
        %p249 = pneg %p193
      $region34: #{tpu_custom_call.1} parent=11 // pred_check_branch
        %251 = sbr.rel (%p249) target = $region36
      $region35: #{tpu_custom_call.1} parent=11 // pred_region
        _
      $region36: #{tpu_custom_call.1} parent=11 // pred_fallthru
        _
    $region12: #{tpu_custom_call.1} parent=5 // pred_fallthru
      _
    %p252 = scmp.lt.s32.totalorder %s15, 2
    // Predicated region
    $region37: #{tpu_custom_call.1} parent=5 // pred_check
      %p253 = pneg %p252
    $region38: #{tpu_custom_call.1} parent=5 // pred_check_branch
      %255 = sbr.rel (%p253) target = $region40
    $region39: #{tpu_custom_call.1} parent=5 // pred_region
      // Predicated region
      $region41: #{tpu_custom_call.1} parent=39 // pred_check
        %p256 = pneg %p35
      $region42: #{tpu_custom_call.1} parent=39 // pred_check_branch
        %258 = sbr.rel (%p256) target = $region44
      $region43: #{tpu_custom_call.1} parent=39 // pred_region
        %s259 = smul.u32 19, %s15
        %p260 = scmp.lt.s32.totalorder %s259, 37
        %s261 = scalar_select %p260, %s259, 37
        %s262 = smul.addr %s261, 8
        %s263 = scalar_lea.vmem %s0, %s262
        %s264 = smul.u32 19, %s15
      $region44: #{tpu_custom_call.1} parent=39 // pred_fallthru
        _
      // Predicated region
      $region45: #{tpu_custom_call.1} parent=39 // pred_check
        %p265 = pneg %p61
      $region46: #{tpu_custom_call.1} parent=39 // pred_check_branch
        %267 = sbr.rel (%p265) target = $region48
      $region47: #{tpu_custom_call.1} parent=39 // pred_region
        %s268 = smul.u32 19, %s15
        %p269 = scmp.lt.s32.totalorder %s268, 37
        %s270 = scalar_select %p269, %s268, 37
        %s271 = smul.addr %s270, 8
        %s272 = scalar_lea.vmem %s1, %s271
        %s273 = smul.u32 19, %s15
      $region48: #{tpu_custom_call.1} parent=39 // pred_fallthru
        _
    $region40: #{tpu_custom_call.1} parent=5 // pred_fallthru
      _
    %p274 = scmp.le.s32.totalorder 1, %s15
    %p275 = scmp.lt.s32.totalorder %s15, 3
    %p276 = pnand %p274, %p275
    %p277 = pneg %p276
    // Predicated region
    $region49: #{tpu_custom_call.1} parent=5 // pred_check
      _
    $region50: #{tpu_custom_call.1} parent=5 // pred_check_branch
      %279 = sbr.rel (%p276) target = $region52
    $region51: #{tpu_custom_call.1} parent=5 // pred_region
      %s280 = ssub.s32 %s15, 1
      %s281 = smul.u32 19, %s20
      %p282 = scmp.lt.s32.totalorder %s281, 37
      %s283 = scalar_select %p282, %s281, 37
      %s284 = smul.addr %s283, 8
      %s285 = scalar_lea.vmem %s0, %s284
      %p286 = pneg %p41
      %p287 = pneg %p38
      %s288 = smul.u32 19, %s20
      %p289 = scmp.lt.s32.totalorder %s288, 37
      %s290 = scalar_select %p289, %s288, 37
      %s291 = smul.addr %s290, 8
      %s292 = scalar_lea.vmem %s1, %s291
      %p293 = pneg %p67
      %p294 = pneg %p64
      %p295 = pneg %p88
      %p296 = pneg %p85
      %p297 = pneg %p109
      %p298 = pneg %p106
      %p299 = pneg %p130
      %p300 = pneg %p127
      %p301 = pneg %p151
      %p302 = pneg %p148
      %p303 = pneg %p172
      %p304 = pneg %p169
      %p305 = pneg %p193
      %p306 = pneg %p190
      %p307 = pneg %p219
      %p308 = pneg %p216
      %s309 = smul.u32 19, %s20
      %p310 = scmp.lt.s32.totalorder %s309, 37
      %s311 = scalar_select %p310, %s309, 37
      %s312 = smul.addr %s311, 8
      %s313 = scalar_lea.vmem %s8, %s312
      %s314 = smul.u32 19, %s20
      %p315 = scmp.lt.s32.totalorder %s314, 37
      %s316 = scalar_select %p315, %s314, 37
      %s317 = smul.addr %s316, 8
      %s318 = scalar_lea.vmem %s0, %s317
      %s319 = smul.u32 19, %s20
      %s320 = smul.u32 19, %s20
      %p321 = scmp.lt.s32.totalorder %s320, 37
      %s322 = scalar_select %p321, %s320, 37
      %s323 = smul.addr %s322, 8
      %s324 = scalar_lea.vmem %s1, %s323
      %s325 = smul.u32 19, %s20
      %s326 = smul.u32 19, %s20
      %p327 = scmp.lt.s32.totalorder %s326, 37
      %s328 = scalar_select %p327, %s326, 37
      %s329 = smul.addr %s328, 8
      %s330 = scalar_lea.vmem %s8, %s329
      %s331 = smul.u32 19, %s20
      %v333 = vld [vmem:[%s318] sm:$0xff]
      %v334 = vld [vmem:[%s318 + $0x8] sm:$0xff]
      %v335 = vld [vmem:[%s318 + $0x10] sm:$0xff]
      %v336 = vld [vmem:[%s318 + $0x18] sm:$0xff]
      %v337 = vld [vmem:[%s318 + $0x20] sm:$0xff]
      %v338 = vld [vmem:[%s318 + $0x28] sm:$0xff]
      %v339 = vld [vmem:[%s318 + $0x30] sm:$0xff]
      %v340 = vld [vmem:[%s318 + $0x38] sm:$0xff]
      %v341 = vld [vmem:[%s318 + $0x40] sm:$0xff]
      %v342 = vld [vmem:[%s318 + $0x48] sm:$0xff]
      %v343 = vld [vmem:[%s318 + $0x50] sm:$0xff]
      %v344 = vld [vmem:[%s318 + $0x58] sm:$0xff]
      %v345 = vld [vmem:[%s318 + $0x60] sm:$0xff]
      %v346 = vld [vmem:[%s318 + $0x68] sm:$0xff]
      %v347 = vld [vmem:[%s318 + $0x70] sm:$0xff]
      %v348 = vld [vmem:[%s318 + $0x78] sm:$0xff]
      %v349 = vld [vmem:[%s318 + $0x80] sm:$0xff]
      %v350 = vld [vmem:[%s318 + $0x88] sm:$0xff]
      %v351 = vld [vmem:[%s318 + $0x90] sm:$0xff]
      %v352 = vld [vmem:[%s324] sm:$0xff]
      %v353 = vld [vmem:[%s324 + $0x8] sm:$0xff]
      %v354 = vld [vmem:[%s324 + $0x10] sm:$0xff]
      %v355 = vld [vmem:[%s324 + $0x18] sm:$0xff]
      %v356 = vld [vmem:[%s324 + $0x20] sm:$0xff]
      %v357 = vld [vmem:[%s324 + $0x28] sm:$0xff]
      %v358 = vld [vmem:[%s324 + $0x30] sm:$0xff]
      %v359 = vld [vmem:[%s324 + $0x38] sm:$0xff]
      %v360 = vld [vmem:[%s324 + $0x40] sm:$0xff]
      %v361 = vld [vmem:[%s324 + $0x48] sm:$0xff]
      %v362 = vld [vmem:[%s324 + $0x50] sm:$0xff]
      %v363 = vld [vmem:[%s324 + $0x58] sm:$0xff]
      %v364 = vld [vmem:[%s324 + $0x60] sm:$0xff]
      %v365 = vld [vmem:[%s324 + $0x68] sm:$0xff]
      %v366 = vld [vmem:[%s324 + $0x70] sm:$0xff]
      %v367 = vld [vmem:[%s324 + $0x78] sm:$0xff]
      %v368 = vld [vmem:[%s324 + $0x80] sm:$0xff]
      %v369 = vld [vmem:[%s324 + $0x88] sm:$0xff]
      %v370 = vld [vmem:[%s324 + $0x90] sm:$0xff]
      %390 = vrot.lane.b32.xlu0 %v352, 16
      %v391 = vpop.permute.xlu0 %390
      %392 = vrot.lane.b32.xlu0 %v353, 16
      %v393 = vpop.permute.xlu0 %392
      %394 = vrot.lane.b32.xlu0 %v354, 16
      %v395 = vpop.permute.xlu0 %394
      %396 = vrot.lane.b32.xlu0 %v355, 16
      %v397 = vpop.permute.xlu0 %396
      %398 = vrot.lane.b32.xlu0 %v356, 16
      %v399 = vpop.permute.xlu0 %398
      %400 = vrot.lane.b32.xlu0 %v357, 16
      %v401 = vpop.permute.xlu0 %400
      %402 = vrot.lane.b32.xlu0 %v358, 16
      %v403 = vpop.permute.xlu0 %402
      %404 = vrot.lane.b32.xlu0 %v359, 16
      %v405 = vpop.permute.xlu0 %404
      %406 = vrot.lane.b32.xlu0 %v360, 16
      %v407 = vpop.permute.xlu0 %406
      %408 = vrot.lane.b32.xlu0 %v361, 16
      %v409 = vpop.permute.xlu0 %408
      %410 = vrot.lane.b32.xlu0 %v362, 16
      %v411 = vpop.permute.xlu0 %410
      %412 = vrot.lane.b32.xlu0 %v363, 16
      %v413 = vpop.permute.xlu0 %412
      %414 = vrot.lane.b32.xlu0 %v364, 16
      %v415 = vpop.permute.xlu0 %414
      %416 = vrot.lane.b32.xlu0 %v365, 16
      %v417 = vpop.permute.xlu0 %416
      %418 = vrot.lane.b32.xlu0 %v366, 16
      %v419 = vpop.permute.xlu0 %418
      %420 = vrot.lane.b32.xlu0 %v367, 16
      %v421 = vpop.permute.xlu0 %420
      %422 = vrot.lane.b32.xlu0 %v368, 16
      %v423 = vpop.permute.xlu0 %422
      %424 = vrot.lane.b32.xlu0 %v369, 16
      %v425 = vpop.permute.xlu0 %424
      %426 = vrot.lane.b32.xlu0 %v370, 16
      %v427 = vpop.permute.xlu0 %426
      %vm447 = vcmask 130048
      %v448 = vsel %vm447, %v333, %v391
      %v449 = vsel %vm447, %v334, %v393
      %v450 = vsel %vm447, %v335, %v395
      %v451 = vsel %vm447, %v336, %v397
      %v452 = vsel %vm447, %v337, %v399
      %v453 = vsel %vm447, %v338, %v401
      %v454 = vsel %vm447, %v339, %v403
      %v455 = vsel %vm447, %v340, %v405
      %v456 = vsel %vm447, %v341, %v407
      %v457 = vsel %vm447, %v342, %v409
      %v458 = vsel %vm447, %v343, %v411
      %v459 = vsel %vm447, %v344, %v413
      %v460 = vsel %vm447, %v345, %v415
      %v461 = vsel %vm447, %v346, %v417
      %v462 = vsel %vm447, %v347, %v419
      %v463 = vsel %vm447, %v348, %v421
      %v464 = vsel %vm447, %v349, %v423
      %v465 = vsel %vm447, %v350, %v425
      %v466 = vsel %vm447, %v351, %v427
      %v467 = vpack.c.bf16 %v449, %v448
      %v468 = vpack.c.bf16 %v451, %v450
      %v469 = vpack.c.bf16 %v453, %v452
      %v470 = vpack.c.bf16 %v455, %v454
      %v471 = vpack.c.bf16 %v457, %v456
      %v472 = vpack.c.bf16 %v459, %v458
      %v473 = vpack.c.bf16 %v461, %v460
      %v474 = vpack.c.bf16 %v463, %v462
      %v475 = vpack.c.bf16 %v465, %v464
      %v476 = vpack.c.bf16 %v466, %v466
      %v477 = vld [vmem:[%s2] sm:$0xff]
      %v478 = vld [vmem:[%s2 + $0x8] sm:$0xff]
      %v479 = vld [vmem:[%s2 + $0x10] sm:$0xff]
      %v480 = vld [vmem:[%s3] sm:$0x3]
      %v482 = vlaneseq
      %v483 = vshrl.u32 %v482, 7
      %v484 = vsub.s32 0, %v483
      %v485 = vrot.slane %v480, %v484
      %v486 = vlaneseq
      %v487 = vshrl.u32 %v486, 7
      %v488 = vsub.s32 1, %v487
      %v489 = vrot.slane %v480, %v488
      %v495 = vunpack.c.l.b16 %v477
      %v496 = vunpack.c.h.b16 %v477
      %v497 = vunpack.c.l.b16 %v478
      %v498 = vunpack.c.h.b16 %v478
      %v499 = vunpack.c.l.b16 %v479
      %v500 = vunpack.c.h.b16 %v479
      %v501 = vpack.c.b16 %v497, %v495
      %v502 = vpack.c.b16 %v498, %v496
      %v503 = vpack.c.b16 %v499, %v499
      %v504 = vpack.c.b16 %v500, %v500
      %vm507 = vcmask 195584
      %v509 = vsel %vm507, %v467, 0
      %v512 = vsel %vm507, %v468, 0
      %v515 = vsel %vm507, %v469, 0
      %v518 = vsel %vm507, %v470, 0
      %v521 = vsel %vm507, %v471, 0
      %v524 = vsel %vm507, %v472, 0
      %v527 = vsel %vm507, %v473, 0
      %v530 = vsel %vm507, %v474, 0
      %v533 = vsel %vm507, %v475, 0
      %v536 = vsel %vm507, %v476, 0
      %vm538 = vcmask 1043456
      %v540 = vsel %vm538, %v503, 0
      %v543 = vsel %vm538, %v504, 0
      %545 = vmatprep.subr.bf16.mxu0 0
      %546 = vmatpush1.bf16.msra.mxu0 0
      %547 = vmatprep.subr.bf16.mxu0 0
      %548 = vmatpush1.bf16.msra.mxu0 0
      %549 = vmatprep.subr.bf16.mxu0 0
      %550 = vmatpush1.bf16.msra.mxu0 0
      %551 = vmatprep.subr.bf16.mxu0 0
      %552 = vmatpush1.bf16.msra.mxu0 0
      %553 = vmatprep.subr.bf16.mxu0 0
      %554 = vmatpush1.bf16.msra.mxu0 0
      %555 = vmatprep.subr.bf16.mxu0 0
      %556 = vmatpush1.bf16.msra.mxu0 0
      %557 = vmatprep.subr.bf16.mxu0 %v543
      %558 = vmatpush1.bf16.msra.mxu0 %v540
      %559 = vmatprep.subr.bf16.mxu0 %v502
      %560 = vmatpush1.bf16.msra.mxu0 %v501
      %561 = vmatprep.subr.bf16.mxu0 0
      %562 = vmatpush2.bf16.msra.mxu0 0
      %563 = vmatprep.subr.bf16.mxu0 0
      %564 = vmatpush2.bf16.msra.mxu0 0
      %565 = vmatprep.subr.bf16.mxu0 0
      %566 = vmatpush2.bf16.msra.mxu0 0
      %567 = vmatprep.subr.bf16.mxu0 0
      %568 = vmatpush2.bf16.msra.mxu0 0
      %569 = vmatprep.subr.bf16.mxu0 0
      %570 = vmatpush2.bf16.msra.mxu0 0
      %571 = vmatprep.subr.bf16.mxu0 0
      %572 = vmatpush2.bf16.msra.mxu0 0
      %573 = vmatprep.subr.bf16.mxu0 0
      %574 = vmatpush2.bf16.msra.mxu0 0
      %575 = vmatprep.subr.bf16.mxu0 0
      %576 = vmatpush2.bf16.msra.mxu0 0
      %577 = vmatprep.mubr.bf16.mxu0 0
      %578 = vmatmul.mubr.bf16.gmra.mxu0 %v509
      %v579 = vpop.f32.mrf.mxu0
      %v580 = vadd.f32 %v485, %v579
      %v581 = vpop.f32.mrf.mxu0
      %v582 = vadd.f32 %v489, %v581
      %v583 = vpop.f32.mrf.mxu0
      %v584 = vadd.f32 %v485, %v583
      %v585 = vpop.f32.mrf.mxu0
      %v586 = vadd.f32 %v489, %v585
      %587 = vmatprep.mubr.bf16.mxu0 0
      %588 = vmatmul.mubr.bf16.gmra.mxu0 %v512
      %v589 = vpop.f32.mrf.mxu0
      %v590 = vadd.f32 %v485, %v589
      %v591 = vpop.f32.mrf.mxu0
      %v592 = vadd.f32 %v489, %v591
      %v593 = vpop.f32.mrf.mxu0
      %v594 = vadd.f32 %v485, %v593
      %v595 = vpop.f32.mrf.mxu0
      %v596 = vadd.f32 %v489, %v595
      %597 = vmatprep.mubr.bf16.mxu0 0
      %598 = vmatmul.mubr.bf16.gmra.mxu0 %v515
      %v599 = vpop.f32.mrf.mxu0
      %v600 = vadd.f32 %v485, %v599
      %v601 = vpop.f32.mrf.mxu0
      %v602 = vadd.f32 %v489, %v601
      %v603 = vpop.f32.mrf.mxu0
      %v604 = vadd.f32 %v485, %v603
      %v605 = vpop.f32.mrf.mxu0
      %v606 = vadd.f32 %v489, %v605
      %607 = vmatprep.mubr.bf16.mxu0 0
      %608 = vmatmul.mubr.bf16.gmra.mxu0 %v518
      %v609 = vpop.f32.mrf.mxu0
      %v610 = vadd.f32 %v485, %v609
      %v611 = vpop.f32.mrf.mxu0
      %v612 = vadd.f32 %v489, %v611
      %v613 = vpop.f32.mrf.mxu0
      %v614 = vadd.f32 %v485, %v613
      %v615 = vpop.f32.mrf.mxu0
      %v616 = vadd.f32 %v489, %v615
      %617 = vmatprep.mubr.bf16.mxu0 0
      %618 = vmatmul.mubr.bf16.gmra.mxu0 %v521
      %v619 = vpop.f32.mrf.mxu0
      %v620 = vadd.f32 %v485, %v619
      %v621 = vpop.f32.mrf.mxu0
      %v622 = vadd.f32 %v489, %v621
      %v623 = vpop.f32.mrf.mxu0
      %v624 = vadd.f32 %v485, %v623
      %v625 = vpop.f32.mrf.mxu0
      %v626 = vadd.f32 %v489, %v625
      %627 = vmatprep.mubr.bf16.mxu0 0
      %628 = vmatmul.mubr.bf16.gmra.mxu0 %v524
      %v629 = vpop.f32.mrf.mxu0
      %v630 = vadd.f32 %v485, %v629
      %v631 = vpop.f32.mrf.mxu0
      %v632 = vadd.f32 %v489, %v631
      %v633 = vpop.f32.mrf.mxu0
      %v634 = vadd.f32 %v485, %v633
      %v635 = vpop.f32.mrf.mxu0
      %v636 = vadd.f32 %v489, %v635
      %637 = vmatprep.mubr.bf16.mxu0 0
      %638 = vmatmul.mubr.bf16.gmra.mxu0 %v527
      %v639 = vpop.f32.mrf.mxu0
      %v640 = vadd.f32 %v485, %v639
      %v641 = vpop.f32.mrf.mxu0
      %v642 = vadd.f32 %v489, %v641
      %v643 = vpop.f32.mrf.mxu0
      %v644 = vadd.f32 %v485, %v643
      %v645 = vpop.f32.mrf.mxu0
      %v646 = vadd.f32 %v489, %v645
      %647 = vmatprep.mubr.bf16.mxu0 0
      %648 = vmatmul.mubr.bf16.gmra.mxu0 %v530
      %v649 = vpop.f32.mrf.mxu0
      %v650 = vadd.f32 %v485, %v649
      %v651 = vpop.f32.mrf.mxu0
      %v652 = vadd.f32 %v489, %v651
      %v653 = vpop.f32.mrf.mxu0
      %v654 = vadd.f32 %v485, %v653
      %v655 = vpop.f32.mrf.mxu0
      %v656 = vadd.f32 %v489, %v655
      %657 = vmatprep.mubr.bf16.mxu0 0
      %658 = vmatmul.mubr.bf16.gmra.mxu0 %v533
      %v659 = vpop.f32.mrf.mxu0
      %v660 = vadd.f32 %v485, %v659
      %v661 = vpop.f32.mrf.mxu0
      %v662 = vadd.f32 %v489, %v661
      %v663 = vpop.f32.mrf.mxu0
      %v664 = vadd.f32 %v485, %v663
      %v665 = vpop.f32.mrf.mxu0
      %v666 = vadd.f32 %v489, %v665
      %667 = vmatprep.mubr.bf16.mxu0 0
      %668 = vmatmul.mubr.bf16.gmra.mxu0 %v536
      %v669 = vpop.f32.mrf.mxu0
      %v670 = vadd.f32 %v485, %v669
      %v671 = vpop.f32.mrf.mxu0
      %v672 = vadd.f32 %v489, %v671
      %v673 = vpop.f32.mrf.mxu0
      %v674 = vpop.f32.mrf.mxu0
      %675 = vdwg.mxu0
      %v676 = vmax.f32 %v580, 0.0
      %v677 = vmax.f32 %v582, 0.0
      %v678 = vmax.f32 %v584, 0.0
      %v679 = vmax.f32 %v586, 0.0
      %v680 = vmax.f32 %v590, 0.0
      %v681 = vmax.f32 %v592, 0.0
      %v682 = vmax.f32 %v594, 0.0
      %v683 = vmax.f32 %v596, 0.0
      %v684 = vmax.f32 %v600, 0.0
      %v685 = vmax.f32 %v602, 0.0
      %v686 = vmax.f32 %v604, 0.0
      %v687 = vmax.f32 %v606, 0.0
      %v688 = vmax.f32 %v610, 0.0
      %v689 = vmax.f32 %v612, 0.0
      %v690 = vmax.f32 %v614, 0.0
      %v691 = vmax.f32 %v616, 0.0
      %v692 = vmax.f32 %v620, 0.0
      %v693 = vmax.f32 %v622, 0.0
      %v694 = vmax.f32 %v624, 0.0
      %v695 = vmax.f32 %v626, 0.0
      %v696 = vmax.f32 %v630, 0.0
      %v697 = vmax.f32 %v632, 0.0
      %v698 = vmax.f32 %v634, 0.0
      %v699 = vmax.f32 %v636, 0.0
      %v700 = vmax.f32 %v640, 0.0
      %v701 = vmax.f32 %v642, 0.0
      %v702 = vmax.f32 %v644, 0.0
      %v703 = vmax.f32 %v646, 0.0
      %v704 = vmax.f32 %v650, 0.0
      %v705 = vmax.f32 %v652, 0.0
      %v706 = vmax.f32 %v654, 0.0
      %v707 = vmax.f32 %v656, 0.0
      %v708 = vmax.f32 %v660, 0.0
      %v709 = vmax.f32 %v662, 0.0
      %v710 = vmax.f32 %v664, 0.0
      %v711 = vmax.f32 %v666, 0.0
      %v712 = vmax.f32 %v670, 0.0
      %v713 = vmax.f32 %v672, 0.0
      %v714 = vpack.c.bf16 %v678, %v676
      %v715 = vpack.c.bf16 %v679, %v677
      %v716 = vpack.c.bf16 %v682, %v680
      %v717 = vpack.c.bf16 %v683, %v681
      %v718 = vpack.c.bf16 %v686, %v684
      %v719 = vpack.c.bf16 %v687, %v685
      %v720 = vpack.c.bf16 %v690, %v688
      %v721 = vpack.c.bf16 %v691, %v689
      %v722 = vpack.c.bf16 %v694, %v692
      %v723 = vpack.c.bf16 %v695, %v693
      %v724 = vpack.c.bf16 %v698, %v696
      %v725 = vpack.c.bf16 %v699, %v697
      %v726 = vpack.c.bf16 %v702, %v700
      %v727 = vpack.c.bf16 %v703, %v701
      %v728 = vpack.c.bf16 %v706, %v704
      %v729 = vpack.c.bf16 %v707, %v705
      %v730 = vpack.c.bf16 %v710, %v708
      %v731 = vpack.c.bf16 %v711, %v709
      %v732 = vpack.c.bf16 %v712, %v712
      %v733 = vpack.c.bf16 %v713, %v713
      %v734 = vld [vmem:[%s4] sm:$0xff]
      %v735 = vld [vmem:[%s4 + $0x8] sm:$0xff]
      %v736 = vld [vmem:[%s4 + $0x10] sm:$0xff]
      %v737 = vld [vmem:[%s4 + $0x18] sm:$0xff]
      %v738 = vld [vmem:[%s4 + $0x20] sm:$0xff]
      %v739 = vld [vmem:[%s4 + $0x28] sm:$0xff]
      %v740 = vld [vmem:[%s4 + $0x30] sm:$0xff]
      %v741 = vld [vmem:[%s4 + $0x38] sm:$0xff]
      %v742 = vld [vmem:[%s4 + $0x40] sm:$0xff]
      %v743 = vld [vmem:[%s4 + $0x48] sm:$0xff]
      %v744 = vld [vmem:[%s4 + $0x50] sm:$0xff]
      %v745 = vld [vmem:[%s4 + $0x58] sm:$0xff]
      %v746 = vld [vmem:[%s4 + $0x60] sm:$0xff]
      %v747 = vld [vmem:[%s4 + $0x68] sm:$0xff]
      %v748 = vld [vmem:[%s4 + $0x70] sm:$0xff]
      %v749 = vld [vmem:[%s4 + $0x78] sm:$0xff]
      %v750 = vld [vmem:[%s4 + $0x80] sm:$0xff]
      %v751 = vld [vmem:[%s4 + $0x88] sm:$0xff]
      %v752 = vld [vmem:[%s4 + $0x90] sm:$0xff]
      %v753 = vld [vmem:[%s4 + $0x98] sm:$0xff]
      %v754 = vld [vmem:[%s4 + $0xa0] sm:$0xff]
      %v755 = vld [vmem:[%s4 + $0xa8] sm:$0xff]
      %v756 = vld [vmem:[%s4 + $0xb0] sm:$0xff]
      %v757 = vld [vmem:[%s4 + $0xb8] sm:$0xff]
      %v758 = vld [vmem:[%s4 + $0xc0] sm:$0xff]
      %v759 = vld [vmem:[%s4 + $0xc8] sm:$0xff]
      %v760 = vld [vmem:[%s4 + $0xd0] sm:$0xff]
      %v761 = vld [vmem:[%s4 + $0xd8] sm:$0xff]
      %v762 = vld [vmem:[%s4 + $0xe0] sm:$0xff]
      %v763 = vld [vmem:[%s4 + $0xe8] sm:$0xff]
      %v764 = vld [vmem:[%s4 + $0xf0] sm:$0xff]
      %v765 = vld [vmem:[%s4 + $0xf8] sm:$0xff]
      %v766 = vld [vmem:[%s5] sm:$0x3]
      %v768 = vlaneseq
      %v769 = vshrl.u32 %v768, 7
      %v770 = vsub.s32 0, %v769
      %v771 = vrot.slane %v766, %v770
      %v772 = vlaneseq
      %v773 = vshrl.u32 %v772, 7
      %v774 = vsub.s32 1, %v773
      %v775 = vrot.slane %v766, %v774
      %v810 = vunpack.c.l.b16 %v734
      %v811 = vunpack.c.h.b16 %v734
      %v812 = vunpack.c.l.b16 %v735
      %v813 = vunpack.c.h.b16 %v735
      %v814 = vunpack.c.l.b16 %v736
      %v815 = vunpack.c.h.b16 %v736
      %v816 = vunpack.c.l.b16 %v737
      %v817 = vunpack.c.h.b16 %v737
      %v818 = vunpack.c.l.b16 %v738
      %v819 = vunpack.c.h.b16 %v738
      %v820 = vunpack.c.l.b16 %v739
      %v821 = vunpack.c.h.b16 %v739
      %v822 = vunpack.c.l.b16 %v740
      %v823 = vunpack.c.h.b16 %v740
      %v824 = vunpack.c.l.b16 %v741
      %v825 = vunpack.c.h.b16 %v741
      %v826 = vunpack.c.l.b16 %v742
      %v827 = vunpack.c.h.b16 %v742
      %v828 = vunpack.c.l.b16 %v743
      %v829 = vunpack.c.h.b16 %v743
      %v830 = vunpack.c.l.b16 %v744
      %v831 = vunpack.c.h.b16 %v744
      %v832 = vunpack.c.l.b16 %v745
      %v833 = vunpack.c.h.b16 %v745
      %v834 = vunpack.c.l.b16 %v746
      %v835 = vunpack.c.h.b16 %v746
      %v836 = vunpack.c.l.b16 %v747
      %v837 = vunpack.c.h.b16 %v747
      %v838 = vunpack.c.l.b16 %v748
      %v839 = vunpack.c.h.b16 %v748
      %v840 = vunpack.c.l.b16 %v749
      %v841 = vunpack.c.h.b16 %v749
      %v842 = vunpack.c.l.b16 %v750
      %v843 = vunpack.c.h.b16 %v750
      %v844 = vunpack.c.l.b16 %v751
      %v845 = vunpack.c.h.b16 %v751
      %v846 = vunpack.c.l.b16 %v752
      %v847 = vunpack.c.h.b16 %v752
      %v848 = vunpack.c.l.b16 %v753
      %v849 = vunpack.c.h.b16 %v753
      %v850 = vunpack.c.l.b16 %v754
      %v851 = vunpack.c.h.b16 %v754
      %v852 = vunpack.c.l.b16 %v755
      %v853 = vunpack.c.h.b16 %v755
      %v854 = vunpack.c.l.b16 %v756
      %v855 = vunpack.c.h.b16 %v756
      %v856 = vunpack.c.l.b16 %v757
      %v857 = vunpack.c.h.b16 %v757
      %v858 = vunpack.c.l.b16 %v758
      %v859 = vunpack.c.h.b16 %v758
      %v860 = vunpack.c.l.b16 %v759
      %v861 = vunpack.c.h.b16 %v759
      %v862 = vunpack.c.l.b16 %v760
      %v863 = vunpack.c.h.b16 %v760
      %v864 = vunpack.c.l.b16 %v761
      %v865 = vunpack.c.h.b16 %v761
      %v866 = vunpack.c.l.b16 %v762
      %v867 = vunpack.c.h.b16 %v762
      %v868 = vunpack.c.l.b16 %v763
      %v869 = vunpack.c.h.b16 %v763
      %v870 = vunpack.c.l.b16 %v764
      %v871 = vunpack.c.h.b16 %v764
      %v872 = vunpack.c.l.b16 %v765
      %v873 = vunpack.c.h.b16 %v765
      %v874 = vpack.c.b16 %v812, %v810
      %v875 = vpack.c.b16 %v813, %v811
      %v876 = vpack.c.b16 %v816, %v814
      %v877 = vpack.c.b16 %v817, %v815
      %v878 = vpack.c.b16 %v820, %v818
      %v879 = vpack.c.b16 %v821, %v819
      %v880 = vpack.c.b16 %v824, %v822
      %v881 = vpack.c.b16 %v825, %v823
      %v882 = vpack.c.b16 %v828, %v826
      %v883 = vpack.c.b16 %v829, %v827
      %v884 = vpack.c.b16 %v832, %v830
      %v885 = vpack.c.b16 %v833, %v831
      %v886 = vpack.c.b16 %v836, %v834
      %v887 = vpack.c.b16 %v837, %v835
      %v888 = vpack.c.b16 %v840, %v838
      %v889 = vpack.c.b16 %v841, %v839
      %v890 = vpack.c.b16 %v844, %v842
      %v891 = vpack.c.b16 %v845, %v843
      %v892 = vpack.c.b16 %v848, %v846
      %v893 = vpack.c.b16 %v849, %v847
      %v894 = vpack.c.b16 %v852, %v850
      %v895 = vpack.c.b16 %v853, %v851
      %v896 = vpack.c.b16 %v856, %v854
      %v897 = vpack.c.b16 %v857, %v855
      %v898 = vpack.c.b16 %v860, %v858
      %v899 = vpack.c.b16 %v861, %v859
      %v900 = vpack.c.b16 %v864, %v862
      %v901 = vpack.c.b16 %v865, %v863
      %v902 = vpack.c.b16 %v868, %v866
      %v903 = vpack.c.b16 %v869, %v867
      %v904 = vpack.c.b16 %v872, %v870
      %v905 = vpack.c.b16 %v873, %v871
      %938 = vmatprep.subr.bf16.mxu0 %v889
      %939 = vmatpush1.bf16.msra.mxu0 %v888
      %940 = vmatprep.subr.bf16.mxu0 %v887
      %941 = vmatpush1.bf16.msra.mxu0 %v886
      %942 = vmatprep.subr.bf16.mxu0 %v885
      %943 = vmatpush1.bf16.msra.mxu0 %v884
      %944 = vmatprep.subr.bf16.mxu0 %v883
      %945 = vmatpush1.bf16.msra.mxu0 %v882
      %946 = vmatprep.subr.bf16.mxu0 %v881
      %947 = vmatpush1.bf16.msra.mxu0 %v880
      %948 = vmatprep.subr.bf16.mxu0 %v879
      %949 = vmatpush1.bf16.msra.mxu0 %v878
      %950 = vmatprep.subr.bf16.mxu0 %v877
      %951 = vmatpush1.bf16.msra.mxu0 %v876
      %952 = vmatprep.subr.bf16.mxu0 %v875
      %953 = vmatpush1.bf16.msra.mxu0 %v874
      %954 = vmatprep.subr.bf16.mxu0 %v905
      %955 = vmatpush2.bf16.msra.mxu0 %v904
      %956 = vmatprep.subr.bf16.mxu0 %v903
      %957 = vmatpush2.bf16.msra.mxu0 %v902
      %958 = vmatprep.subr.bf16.mxu0 %v901
      %959 = vmatpush2.bf16.msra.mxu0 %v900
      %960 = vmatprep.subr.bf16.mxu0 %v899
      %961 = vmatpush2.bf16.msra.mxu0 %v898
      %962 = vmatprep.subr.bf16.mxu0 %v897
      %963 = vmatpush2.bf16.msra.mxu0 %v896
      %964 = vmatprep.subr.bf16.mxu0 %v895
      %965 = vmatpush2.bf16.msra.mxu0 %v894
      %966 = vmatprep.subr.bf16.mxu0 %v893
      %967 = vmatpush2.bf16.msra.mxu0 %v892
      %968 = vmatprep.subr.bf16.mxu0 %v891
      %969 = vmatpush2.bf16.msra.mxu0 %v890
      %970 = vmatprep.mubr.bf16.mxu0 %v715
      %971 = vmatmul.mubr.bf16.gmra.mxu0 %v714
      %v972 = vpop.f32.mrf.mxu0
      %v973 = vadd.f32 %v771, %v972
      %v974 = vpop.f32.mrf.mxu0
      %v975 = vadd.f32 %v775, %v974
      %v976 = vpop.f32.mrf.mxu0
      %v977 = vadd.f32 %v771, %v976
      %v978 = vpop.f32.mrf.mxu0
      %v979 = vadd.f32 %v775, %v978
      %980 = vmatprep.mubr.bf16.mxu0 %v717
      %981 = vmatmul.mubr.bf16.gmra.mxu0 %v716
      %v982 = vpop.f32.mrf.mxu0
      %v983 = vadd.f32 %v771, %v982
      %v984 = vpop.f32.mrf.mxu0
      %v985 = vadd.f32 %v775, %v984
      %v986 = vpop.f32.mrf.mxu0
      %v987 = vadd.f32 %v771, %v986
      %v988 = vpop.f32.mrf.mxu0
      %v989 = vadd.f32 %v775, %v988
      %990 = vmatprep.mubr.bf16.mxu0 %v719
      %991 = vmatmul.mubr.bf16.gmra.mxu0 %v718
      %v992 = vpop.f32.mrf.mxu0
      %v993 = vadd.f32 %v771, %v992
      %v994 = vpop.f32.mrf.mxu0
      %v995 = vadd.f32 %v775, %v994
      %v996 = vpop.f32.mrf.mxu0
      %v997 = vadd.f32 %v771, %v996
      %v998 = vpop.f32.mrf.mxu0
      %v999 = vadd.f32 %v775, %v998
      %1000 = vmatprep.mubr.bf16.mxu0 %v721
      %1001 = vmatmul.mubr.bf16.gmra.mxu0 %v720
      %v1002 = vpop.f32.mrf.mxu0
      %v1003 = vadd.f32 %v771, %v1002
      %v1004 = vpop.f32.mrf.mxu0
      %v1005 = vadd.f32 %v775, %v1004
      %v1006 = vpop.f32.mrf.mxu0
      %v1007 = vadd.f32 %v771, %v1006
      %v1008 = vpop.f32.mrf.mxu0
      %v1009 = vadd.f32 %v775, %v1008
      %1010 = vmatprep.mubr.bf16.mxu0 %v723
      %1011 = vmatmul.mubr.bf16.gmra.mxu0 %v722
      %v1012 = vpop.f32.mrf.mxu0
      %v1013 = vadd.f32 %v771, %v1012
      %v1014 = vpop.f32.mrf.mxu0
      %v1015 = vadd.f32 %v775, %v1014
      %v1016 = vpop.f32.mrf.mxu0
      %v1017 = vadd.f32 %v771, %v1016
      %v1018 = vpop.f32.mrf.mxu0
      %v1019 = vadd.f32 %v775, %v1018
      %1020 = vmatprep.mubr.bf16.mxu0 %v725
      %1021 = vmatmul.mubr.bf16.gmra.mxu0 %v724
      %v1022 = vpop.f32.mrf.mxu0
      %v1023 = vadd.f32 %v771, %v1022
      %v1024 = vpop.f32.mrf.mxu0
      %v1025 = vadd.f32 %v775, %v1024
      %v1026 = vpop.f32.mrf.mxu0
      %v1027 = vadd.f32 %v771, %v1026
      %v1028 = vpop.f32.mrf.mxu0
      %v1029 = vadd.f32 %v775, %v1028
      %1030 = vmatprep.mubr.bf16.mxu0 %v727
      %1031 = vmatmul.mubr.bf16.gmra.mxu0 %v726
      %v1032 = vpop.f32.mrf.mxu0
      %v1033 = vadd.f32 %v771, %v1032
      %v1034 = vpop.f32.mrf.mxu0
      %v1035 = vadd.f32 %v775, %v1034
      %v1036 = vpop.f32.mrf.mxu0
      %v1037 = vadd.f32 %v771, %v1036
      %v1038 = vpop.f32.mrf.mxu0
      %v1039 = vadd.f32 %v775, %v1038
      %1040 = vmatprep.mubr.bf16.mxu0 %v729
      %1041 = vmatmul.mubr.bf16.gmra.mxu0 %v728
      %v1042 = vpop.f32.mrf.mxu0
      %v1043 = vadd.f32 %v771, %v1042
      %v1044 = vpop.f32.mrf.mxu0
      %v1045 = vadd.f32 %v775, %v1044
      %v1046 = vpop.f32.mrf.mxu0
      %v1047 = vadd.f32 %v771, %v1046
      %v1048 = vpop.f32.mrf.mxu0
      %v1049 = vadd.f32 %v775, %v1048
      %1050 = vmatprep.mubr.bf16.mxu0 %v731
      %1051 = vmatmul.mubr.bf16.gmra.mxu0 %v730
      %v1052 = vpop.f32.mrf.mxu0
      %v1053 = vadd.f32 %v771, %v1052
      %v1054 = vpop.f32.mrf.mxu0
      %v1055 = vadd.f32 %v775, %v1054
      %v1056 = vpop.f32.mrf.mxu0
      %v1057 = vadd.f32 %v771, %v1056
      %v1058 = vpop.f32.mrf.mxu0
      %v1059 = vadd.f32 %v775, %v1058
      %1060 = vmatprep.mubr.bf16.mxu0 %v733
      %1061 = vmatmul.mubr.bf16.gmra.mxu0 %v732
      %v1062 = vpop.f32.mrf.mxu0
      %v1063 = vadd.f32 %v771, %v1062
      %v1064 = vpop.f32.mrf.mxu0
      %v1065 = vadd.f32 %v775, %v1064
      %v1066 = vpop.f32.mrf.mxu0
      %v1067 = vpop.f32.mrf.mxu0
      %1068 = vdwg.mxu0
      %v1069 = vmax.f32 %v973, 0.0
      %v1070 = vmax.f32 %v975, 0.0
      %v1071 = vmax.f32 %v977, 0.0
      %v1072 = vmax.f32 %v979, 0.0
      %v1073 = vmax.f32 %v983, 0.0
      %v1074 = vmax.f32 %v985, 0.0
      %v1075 = vmax.f32 %v987, 0.0
      %v1076 = vmax.f32 %v989, 0.0
      %v1077 = vmax.f32 %v993, 0.0
      %v1078 = vmax.f32 %v995, 0.0
      %v1079 = vmax.f32 %v997, 0.0
      %v1080 = vmax.f32 %v999, 0.0
      %v1081 = vmax.f32 %v1003, 0.0
      %v1082 = vmax.f32 %v1005, 0.0
      %v1083 = vmax.f32 %v1007, 0.0
      %v1084 = vmax.f32 %v1009, 0.0
      %v1085 = vmax.f32 %v1013, 0.0
      %v1086 = vmax.f32 %v1015, 0.0
      %v1087 = vmax.f32 %v1017, 0.0
      %v1088 = vmax.f32 %v1019, 0.0
      %v1089 = vmax.f32 %v1023, 0.0
      %v1090 = vmax.f32 %v1025, 0.0
      %v1091 = vmax.f32 %v1027, 0.0
      %v1092 = vmax.f32 %v1029, 0.0
      %v1093 = vmax.f32 %v1033, 0.0
      %v1094 = vmax.f32 %v1035, 0.0
      %v1095 = vmax.f32 %v1037, 0.0
      %v1096 = vmax.f32 %v1039, 0.0
      %v1097 = vmax.f32 %v1043, 0.0
      %v1098 = vmax.f32 %v1045, 0.0
      %v1099 = vmax.f32 %v1047, 0.0
      %v1100 = vmax.f32 %v1049, 0.0
      %v1101 = vmax.f32 %v1053, 0.0
      %v1102 = vmax.f32 %v1055, 0.0
      %v1103 = vmax.f32 %v1057, 0.0
      %v1104 = vmax.f32 %v1059, 0.0
      %v1105 = vmax.f32 %v1063, 0.0
      %v1106 = vmax.f32 %v1065, 0.0
      %v1107 = vld [vmem:[%s6] sm:$0x3]
      %v1108 = vunpack.c.l.bf16 %v1107
      %v1110 = vlaneseq
      %v1111 = vshrl.u32 %v1110, 7
      %v1112 = vsub.s32 0, %v1111
      %v1113 = vrot.slane %v1108, %v1112
      %v1114 = vlaneseq
      %v1115 = vshrl.u32 %v1114, 7
      %v1116 = vsub.s32 2, %v1115
      %v1117 = vrot.slane %v1108, %v1116
      %v1120 = vlaneseq
      %v1121 = vshrl.u32 %v1120, 7
      %v1122 = vsub.s32 0, %v1121
      %v1123 = vrot.slane %v1113, %v1122
      %v1124 = vlaneseq
      %v1125 = vshrl.u32 %v1124, 7
      %v1126 = vsub.s32 0, %v1125
      %v1127 = vrot.slane %v1117, %v1126
      %v1128 = vmul.f32 %v1069, %v1123
      %v1129 = vmul.f32 %v1070, %v1127
      %v1130 = vmul.f32 %v1071, %v1123
      %v1131 = vmul.f32 %v1072, %v1127
      %v1132 = vmul.f32 %v1073, %v1123
      %v1133 = vmul.f32 %v1074, %v1127
      %v1134 = vmul.f32 %v1075, %v1123
      %v1135 = vmul.f32 %v1076, %v1127
      %v1136 = vmul.f32 %v1077, %v1123
      %v1137 = vmul.f32 %v1078, %v1127
      %v1138 = vmul.f32 %v1079, %v1123
      %v1139 = vmul.f32 %v1080, %v1127
      %v1140 = vmul.f32 %v1081, %v1123
      %v1141 = vmul.f32 %v1082, %v1127
      %v1142 = vmul.f32 %v1083, %v1123
      %v1143 = vmul.f32 %v1084, %v1127
      %v1144 = vmul.f32 %v1085, %v1123
      %v1145 = vmul.f32 %v1086, %v1127
      %v1146 = vmul.f32 %v1087, %v1123
      %v1147 = vmul.f32 %v1088, %v1127
      %v1148 = vmul.f32 %v1089, %v1123
      %v1149 = vmul.f32 %v1090, %v1127
      %v1150 = vmul.f32 %v1091, %v1123
      %v1151 = vmul.f32 %v1092, %v1127
      %v1152 = vmul.f32 %v1093, %v1123
      %v1153 = vmul.f32 %v1094, %v1127
      %v1154 = vmul.f32 %v1095, %v1123
      %v1155 = vmul.f32 %v1096, %v1127
      %v1156 = vmul.f32 %v1097, %v1123
      %v1157 = vmul.f32 %v1098, %v1127
      %v1158 = vmul.f32 %v1099, %v1123
      %v1159 = vmul.f32 %v1100, %v1127
      %v1160 = vmul.f32 %v1101, %v1123
      %v1161 = vmul.f32 %v1102, %v1127
      %v1162 = vmul.f32 %v1103, %v1123
      %v1163 = vmul.f32 %v1104, %v1127
      %v1164 = vmul.f32 %v1105, %v1123
      %v1165 = vmul.f32 %v1106, %v1127
      %v1166 = vadd.f32 %v1128, %v1129
      %1167 = vadd.xlane.f32.xlu0 %v1166
      %v1168 = vpop.xlane.xlu0 %1167
      %v1169 = vadd.f32 %v1130, %v1131
      %1170 = vadd.xlane.f32.xlu0 %v1169
      %v1171 = vpop.xlane.xlu0 %1170
      %v1172 = vadd.f32 %v1132, %v1133
      %1173 = vadd.xlane.f32.xlu0 %v1172
      %v1174 = vpop.xlane.xlu0 %1173
      %v1175 = vadd.f32 %v1134, %v1135
      %1176 = vadd.xlane.f32.xlu0 %v1175
      %v1177 = vpop.xlane.xlu0 %1176
      %v1178 = vadd.f32 %v1136, %v1137
      %1179 = vadd.xlane.f32.xlu0 %v1178
      %v1180 = vpop.xlane.xlu0 %1179
      %v1181 = vadd.f32 %v1138, %v1139
      %1182 = vadd.xlane.f32.xlu0 %v1181
      %v1183 = vpop.xlane.xlu0 %1182
      %v1184 = vadd.f32 %v1140, %v1141
      %1185 = vadd.xlane.f32.xlu0 %v1184
      %v1186 = vpop.xlane.xlu0 %1185
      %v1187 = vadd.f32 %v1142, %v1143
      %1188 = vadd.xlane.f32.xlu0 %v1187
      %v1189 = vpop.xlane.xlu0 %1188
      %v1190 = vadd.f32 %v1144, %v1145
      %1191 = vadd.xlane.f32.xlu0 %v1190
      %v1192 = vpop.xlane.xlu0 %1191
      %v1193 = vadd.f32 %v1146, %v1147
      %1194 = vadd.xlane.f32.xlu0 %v1193
      %v1195 = vpop.xlane.xlu0 %1194
      %v1196 = vadd.f32 %v1148, %v1149
      %1197 = vadd.xlane.f32.xlu0 %v1196
      %v1198 = vpop.xlane.xlu0 %1197
      %v1199 = vadd.f32 %v1150, %v1151
      %1200 = vadd.xlane.f32.xlu0 %v1199
      %v1201 = vpop.xlane.xlu0 %1200
      %v1202 = vadd.f32 %v1152, %v1153
      %1203 = vadd.xlane.f32.xlu0 %v1202
      %v1204 = vpop.xlane.xlu0 %1203
      %v1205 = vadd.f32 %v1154, %v1155
      %1206 = vadd.xlane.f32.xlu0 %v1205
      %v1207 = vpop.xlane.xlu0 %1206
      %v1208 = vadd.f32 %v1156, %v1157
      %1209 = vadd.xlane.f32.xlu0 %v1208
      %v1210 = vpop.xlane.xlu0 %1209
      %v1211 = vadd.f32 %v1158, %v1159
      %1212 = vadd.xlane.f32.xlu0 %v1211
      %v1213 = vpop.xlane.xlu0 %1212
      %v1214 = vadd.f32 %v1160, %v1161
      %1215 = vadd.xlane.f32.xlu0 %v1214
      %v1216 = vpop.xlane.xlu0 %1215
      %v1217 = vadd.f32 %v1162, %v1163
      %1218 = vadd.xlane.f32.xlu0 %v1217
      %v1219 = vpop.xlane.xlu0 %1218
      %v1220 = vadd.f32 %v1164, %v1165
      %1221 = vadd.xlane.f32.xlu0 %v1220
      %v1222 = vpop.xlane.xlu0 %1221
      %s1223 = sld [smem:[#allocation2]]
      %v1224 = vstv %s1223
      %v1225 = vadd.f32 %v1168, %v1224
      %v1226 = vadd.f32 %v1171, %v1224
      %v1227 = vadd.f32 %v1174, %v1224
      %v1228 = vadd.f32 %v1177, %v1224
      %v1229 = vadd.f32 %v1180, %v1224
      %v1230 = vadd.f32 %v1183, %v1224
      %v1231 = vadd.f32 %v1186, %v1224
      %v1232 = vadd.f32 %v1189, %v1224
      %v1233 = vadd.f32 %v1192, %v1224
      %v1234 = vadd.f32 %v1195, %v1224
      %v1235 = vadd.f32 %v1198, %v1224
      %v1236 = vadd.f32 %v1201, %v1224
      %v1237 = vadd.f32 %v1204, %v1224
      %v1238 = vadd.f32 %v1207, %v1224
      %v1239 = vadd.f32 %v1210, %v1224
      %v1240 = vadd.f32 %v1213, %v1224
      %v1241 = vadd.f32 %v1216, %v1224
      %v1242 = vadd.f32 %v1219, %v1224
      %v1243 = vadd.f32 %v1222, %v1224
      %vm1244 = vcmask 7168
      %1245 = vst.msk [vmem:[%s330] sm:$0xff] %vm1244, %v1225
      %1246 = vst.msk [vmem:[%s330 + $0x8] sm:$0xff] %vm1244, %v1226
      %1247 = vst.msk [vmem:[%s330 + $0x10] sm:$0xff] %vm1244, %v1227
      %1248 = vst.msk [vmem:[%s330 + $0x18] sm:$0xff] %vm1244, %v1228
      %1249 = vst.msk [vmem:[%s330 + $0x20] sm:$0xff] %vm1244, %v1229
      %1250 = vst.msk [vmem:[%s330 + $0x28] sm:$0xff] %vm1244, %v1230
      %1251 = vst.msk [vmem:[%s330 + $0x30] sm:$0xff] %vm1244, %v1231
      %1252 = vst.msk [vmem:[%s330 + $0x38] sm:$0xff] %vm1244, %v1232
      %1253 = vst.msk [vmem:[%s330 + $0x40] sm:$0xff] %vm1244, %v1233
      %1254 = vst.msk [vmem:[%s330 + $0x48] sm:$0xff] %vm1244, %v1234
      %1255 = vst.msk [vmem:[%s330 + $0x50] sm:$0xff] %vm1244, %v1235
      %1256 = vst.msk [vmem:[%s330 + $0x58] sm:$0xff] %vm1244, %v1236
      %1257 = vst.msk [vmem:[%s330 + $0x60] sm:$0xff] %vm1244, %v1237
      %1258 = vst.msk [vmem:[%s330 + $0x68] sm:$0xff] %vm1244, %v1238
      %1259 = vst.msk [vmem:[%s330 + $0x70] sm:$0xff] %vm1244, %v1239
      %1260 = vst.msk [vmem:[%s330 + $0x78] sm:$0xff] %vm1244, %v1240
      %1261 = vst.msk [vmem:[%s330 + $0x80] sm:$0xff] %vm1244, %v1241
      %1262 = vst.msk [vmem:[%s330 + $0x88] sm:$0xff] %vm1244, %v1242
      %1263 = vst.msk [vmem:[%s330 + $0x90] sm:$0xff] %vm1244, %v1243
      %s1264 = smul.u32 19, %s20
      %p1265 = scmp.lt.s32.totalorder %s1264, 37
      %s1266 = scalar_select %p1265, %s1264, 37
      %s1267 = smul.addr %s1266, 8
      %s1268 = scalar_lea.vmem %s8, %s1267
      // Predicated region
      $region53: #{tpu_custom_call.1} parent=51 // pred_check
        %p1269 = pneg %p216
      $region54: #{tpu_custom_call.1} parent=51 // pred_check_branch
        %1271 = sbr.rel (%p1269) target = $region56
      $region55: #{tpu_custom_call.1} parent=51 // pred_region
        %s1272 = smul.u32 19, %s20
      $region56: #{tpu_custom_call.1} parent=51 // pred_fallthru
        _
    $region52: #{tpu_custom_call.1} parent=5 // pred_fallthru
      _
    %p1273 = scmp.le.s32.totalorder 2, %s15
    // Predicated region
    $region57: #{tpu_custom_call.1} parent=5 // pred_check
      %p1274 = pneg %p1273
    $region58: #{tpu_custom_call.1} parent=5 // pred_check_branch
      %1276 = sbr.rel (%p1274) target = $region60
    $region59: #{tpu_custom_call.1} parent=5 // pred_region
      %s1277 = ssub.s32 %s15, 2
      // Predicated region
      $region61: #{tpu_custom_call.1} parent=59 // pred_check
        %p1278 = pneg %p222
      $region62: #{tpu_custom_call.1} parent=59 // pred_check_branch
        %1280 = sbr.rel (%p1278) target = $region64
      $region63: #{tpu_custom_call.1} parent=59 // pred_region
        %s1281 = smul.u32 19, %s21
        %p1282 = scmp.lt.s32.totalorder %s1281, 37
        %s1283 = scalar_select %p1282, %s1281, 37
        %s1284 = smul.addr %s1283, 8
        %s1285 = scalar_lea.vmem %s8, %s1284
      $region64: #{tpu_custom_call.1} parent=59 // pred_fallthru
        _
    $region60: #{tpu_custom_call.1} parent=5 // pred_fallthru
      _
  $region6: #{tpu_custom_call.1} parent=0 // loop_footer
    %s19 = sadd.s32 1, %s15
  $region7: #{tpu_custom_call.1} parent=0 // loop_footer_branch
    %14 = sbr.rel target = $region3
  $region8: #{tpu_custom_call.1} parent=0 // loop_exit
    _

</llo_original>
